<compile_context>
chip_gen: v6e
topology: v6e:2x2x1
jax: 0.10.0
libtpu: 0.0.40
codegen_flags: <defaults>
</compile_context>

<pallas_src>
import jax
import jax.numpy as jnp
from jax.experimental import pallas as pl
from jax.experimental.pallas import tpu as pltpu


def _affine_kernel(x_ref, o_ref):
    # (x + 5) * 2 - 1  ==  2*x + 9 : two VALU ops per vreg instead of three.
    o_ref[...] = x_ref[...] * 2.0 + 9.0


def _pick_max_block_bytes() -> int:
    """Per-generation cap on the per-block byte size."""
    try:
        kind = jax.devices()[0].device_kind.lower()
    except Exception:
        kind = ""
    if "v5" in kind:
        # v5e scoped-VMEM default is only 16 MiB -> keep blocks <= 2 MiB
        # (8 MiB with double-buffered in+out); ~85-90% of its HBM roofline already.
        return 2 << 20
    # v6e / v7x: 4 MiB blocks (16 MiB double-buffered) amortize the ~0.35us/step
    # grid overhead, still well inside the 32 MiB scoped-VMEM default.
    return 4 << 20


def pt_module_forward(x: jax.Array) -> jax.Array:
    """Equivalent of PtModule.forward."""
    orig_shape = x.shape
    total = x.size

    if x.dtype != jnp.float32 or total == 0:
        # Keep PyTorch arithmetic semantics exactly for non-f32 (e.g. integer) inputs.
        return (x + 5) * 2 - 1

    # ---- layout plumbing (metadata-only): flat -> (rows, lane), no pad, no slice ----
    lane = 0
    for cand in (512, 256, 128):
        if total % cand == 0:
            lane = cand
            break
    if lane == 0:
        # TODO(synk): handle ragged tails in-kernel (scalar-prefetch `total` + masked
        # pltpu.store on the last block) instead of falling back to the XLA op.
        return x * 2.0 + 9.0

    rows = total // lane
    x2d = x.reshape(rows, lane)

    # ---- row tiling ----
    if rows < 32:
        block_rows = rows  # tiny input: single full-extent block
    else:
        max_rows = max(8, _pick_max_block_bytes() // (lane * 4))
        # Aim for >= ~8 grid steps (even count balances both v7x TCs); sublane mult of 8.
        target = rows // 8
        block_rows = min(max_rows, max(8, (target // 8) * 8))
        # Prefer a block size that divides rows exactly (unmasked final store);
        # fall back to a ragged (masked) last block otherwise — still correct.
        b = block_rows
        while b >= 8:
            if rows % b == 0:
                block_rows = b
                break
            b -= 8
    grid = (pl.cdiv(rows, block_rows),)

    out2d = pl.pallas_call(
        _affine_kernel,
        out_shape=jax.ShapeDtypeStruct(x2d.shape, x2d.dtype),
        grid_spec=pltpu.PrefetchScalarGridSpec(
            num_scalar_prefetch=0,
            grid=grid,
            in_specs=[pl.BlockSpec((block_rows, lane), lambda i: (i, 0))],
            out_specs=pl.BlockSpec((block_rows, lane), lambda i: (i, 0)),
        ),
        compiler_params=pltpu.CompilerParams(
            # Independent row blocks -> shard across TCs on v7x; harmless elsewhere.
            dimension_semantics=("parallel",),
        ),
        cost_estimate=pl.CostEstimate(
            flops=2 * total,
            transcendentals=0,
            bytes_accessed=2 * total * 4,  # one read + one write of the tensor
        ),
    )(x2d)

    # ---- undo layout plumbing (metadata-only) ----
    return out2d.reshape(orig_shape)


if __name__ == "__main__":
    key = jax.random.PRNGKey(0)
    x = jax.random.normal(key, (2, 4, 16, 16), dtype=jnp.float32)

    out = jax.block_until_ready(pt_module_forward(x))

    # Reference check in plain JAX (mirrors the PyTorch semantics exactly).
    ref = (x + 5.0) * 2.0 - 1.0
    assert out.shape == x.shape and out.dtype == x.dtype
    assert jnp.allclose(out, ref, atol=1e-5, rtol=1e-5)

    print("KERNEL_OK")
</pallas_src>

<mosaic_0001>
module attributes {stable_mosaic.version = 11 : i64} {
  func.func @_affine_kernel(%arg0: i32, %arg1: memref<4x512xf32, #tpu.memory_space<vmem>>, %arg2: memref<4x512xf32, #tpu.memory_space<vmem>>) attributes {dimension_semantics = [#tpu.dimension_semantics<parallel>], iteration_bounds = array<i64: 1>, scalar_prefetch = 0 : i64, scratch_operands = 0 : i64, tpu.core_type = #tpu.core_type<tc>, window_params = [{transform_indices = @transform_0, window_bounds = array<i64: 4, 512>}, {transform_indices = @transform_1, window_bounds = array<i64: 4, 512>}]} {
    %c0 = arith.constant 0 : index
    %c0_0 = arith.constant 0 : index
    %0 = vector.load %arg1[%c0, %c0_0] : memref<4x512xf32, #tpu.memory_space<vmem>>, vector<4x512xf32>
    %cst = arith.constant 2.000000e+00 : f32
    %1 = vector.broadcast %cst : f32 to vector<4x512xf32>
    %2 = arith.mulf %0, %1 : vector<4x512xf32>
    %cst_1 = arith.constant 9.000000e+00 : f32
    %3 = vector.broadcast %cst_1 : f32 to vector<4x512xf32>
    %4 = arith.addf %2, %3 : vector<4x512xf32>
    %c0_2 = arith.constant 0 : index
    %c0_3 = arith.constant 0 : index
    %5 = vector.load %arg2[%c0_2, %c0_3] : memref<4x512xf32, #tpu.memory_space<vmem>>, vector<4x512xf32>
    tpu.vector_store %arg2[%c0_2, %c0_3], %4 {strides = array<i32>} : memref<4x512xf32, #tpu.memory_space<vmem>>, vector<4x512xf32>,
    return
  }
  func.func @transform_0(%arg0: i32) -> (i32, i32) {
    %c0_i32 = arith.constant 0 : i32
    %c0_i32_0 = arith.constant 0 : i32
    return %arg0, %c0_i32 : i32, i32
  }
  func.func @transform_1(%arg0: i32) -> (i32, i32) {
    %c0_i32 = arith.constant 0 : i32
    %c0_i32_0 = arith.constant 0 : i32
    return %arg0, %c0_i32 : i32, i32
  }
}

</mosaic_0001>

<llo_original>
// kernel: tpu_custom_call.1
$region0: #{tpu_custom_call.1}
  #allocation0 [shape = 'u32[]', space=smem, size = 0x4, offset = 0x4, fixed_abs, tag = 'smem constant byte address 0x4 - core index']
  #allocation1 [shape = 'u32[144,128]{1,0:T(1,128)}', space=vmem, size = 0x12000, scoped, tag = 'internal scratch']
  %s0 = inlined_call_operand.hbm [shape: f32[4,512], index: 0, kind: input, shape index: {}]
  %s1 = inlined_call_operand.hbm [shape: f32[4,512], index: 1, kind: output, shape index: {}]
  %s2 = sld [smem:[#allocation0]]
  $region18: #{tpu_custom_call.1} parent=0
    _
  %s4 = ssub.s32 1, %s2
  %s5 = scalar_select 0, %s4, %s2
  $region1: #{tpu_custom_call.1} parent=0
    #allocation2 [shape = 'u8[8192]{0}', space=vmem, size = 0x2000, scoped, tag = 'input window, operand 0, single buffered']
    #allocation3 [shape = 's32[1]{0}', space=sflag, size = 0x4, scoped, tag = 'scoped memory for tpu_custom_call.1']
    #allocation4 [shape = 's32[1]{0}', space=sflag, size = 0x4, scoped, tag = 'scoped memory for tpu_custom_call.1']
    #allocation5 [shape = 'u8[8192]{0}', space=vmem, size = 0x2000, scoped, tag = 'output window, operand 0, single buffered']
    %6 = vsyncpa [#allocation3], 0
    %7 = vsyncpa [#allocation4], 0
    // Predicated region
    $region2: #{tpu_custom_call.1} parent=1 // pred_check
      _
    $region3: #{tpu_custom_call.1} parent=1 // pred_check_branch
      %9 = sbr.rel (0) target = $region5
    $region4: #{tpu_custom_call.1} parent=1 // pred_region
      %s11 = ssub.s32 256, 256
      %12 = vsyncadd [#allocation3], %s11
      %s14 = sshll.u32 [#allocation2], 4
      %s15 = int_to_ptr.vmem [resolvable:$true] %s14
      %17 = dma.hbm_to_vmem [thread:$0]  %s0, 256, %s15, [#allocation3]
    $region5: #{tpu_custom_call.1} parent=1 // pred_fallthru
      _
    // Predicated region
    $region6: #{tpu_custom_call.1} parent=1 // pred_check
      _
    $region7: #{tpu_custom_call.1} parent=1 // pred_check_branch
      %19 = sbr.rel (0) target = $region9
    $region8: #{tpu_custom_call.1} parent=1 // pred_region
      %20 = dma.done [#allocation3], 256
    $region9: #{tpu_custom_call.1} parent=1 // pred_fallthru
      _
    %v21 = vld [vmem:[#allocation2] sm:$0xff]
    %v22 = vld [vmem:[#allocation2 + $0x8] sm:$0xff]
    %v23 = vmul.f32 %v21, 2.0
    %v24 = vmul.f32 %v22, 2.0
    %v25 = vadd.f32 %v23, 9.0
    %v26 = vadd.f32 %v24, 9.0
    %27 = vst [vmem:[#allocation5] sm:$0xff] %v25
    %28 = vst [vmem:[#allocation5 + $0x8] sm:$0xff] %v26
    // Predicated region
    $region10: #{tpu_custom_call.1} parent=1 // pred_check
      _
    $region11: #{tpu_custom_call.1} parent=1 // pred_check_branch
      %30 = sbr.rel (0) target = $region13
    $region12: #{tpu_custom_call.1} parent=1 // pred_region
      %s32 = ssub.s32 256, 256
      %33 = vsyncadd [#allocation4], %s32
      %s35 = sshll.u32 [#allocation5], 4
      %s36 = int_to_ptr.vmem [resolvable:$true] %s35
      %38 = dma.vmem_to_hbm [thread:$0]  %s36, 256, %s1, [#allocation4]
    $region13: #{tpu_custom_call.1} parent=1 // pred_fallthru
      _
    // Predicated region
    $region14: #{tpu_custom_call.1} parent=1 // pred_check
      _
    $region15: #{tpu_custom_call.1} parent=1 // pred_check_branch
      %40 = sbr.rel (0) target = $region17
    $region16: #{tpu_custom_call.1} parent=1 // pred_region
      %41 = dma.done [#allocation4], 256
    $region17: #{tpu_custom_call.1} parent=1 // pred_fallthru
      _
    %42 = vsyncpa [#allocation3], 1
    %43 = vsyncpa [#allocation4], 1

</llo_original>
